<compile_context>
chip_gen: v6e
topology: v6e:2x2x1
jax: 0.10.0
libtpu: 0.0.40
codegen_flags: <defaults>
</compile_context>

<pallas_src>
import math
import functools

import jax
import jax.numpy as jnp
from jax.experimental import pallas as pl
from jax.experimental.pallas import tpu as pltpu

MAX_LEN = 366     # PositionalEncoding(max_len=366)
KPAD = 384        # PE rows padded to a lane-tile multiple (3 * 128)
PACK = 2          # logical (B*S) rows packed per physical kernel row


def _round_up(a: int, b: int) -> int:
    return -(-a // b) * b


def bert_embedding_kernel(x_ref, doy_ref, wx_ref, wpe_ref, bias_ref, out_ref, *, kpad):
    """One row-tile of the fused embedding (PACK=2 logical rows / physical row).

    x_ref   : (TR, 2F)      f32  packed features   [x_even | x_odd]
    doy_ref : (TR, 2)       i32  packed day-of-year [doy_even, doy_odd]
    wx_ref  : (2F, 4E)      f32  block-diagonal linear weight
    wpe_ref : (2*KPAD, 4E)  f32  block-diagonal zero-padded PE table
    bias_ref: (1, 4E)       f32  [b | 0 | b | 0]
    out_ref : (TR, 4E)      f32  [obs_even | pos_even | obs_odd | pos_odd]
    """
    tr = x_ref.shape[0]

    # Feature projection on the MXU (tiny K, amortized over the large tile).
    obs = jnp.dot(x_ref[...], wx_ref[...], preferred_element_type=jnp.float32)

    # PE gather as a one-hot matmul over the packed (doubled) index range.
    # NOTE: out-of-range doy (outside [0, 366)) yields zeros instead of
    # raising like torch's pe[doy] would.
    col = jax.lax.broadcasted_iota(jnp.int32, (tr, 2 * kpad), 1)
    in_hi = col >= kpad
    k = col - jnp.where(in_hi, kpad, 0)
    target = jnp.where(in_hi, doy_ref[:, 1:2], doy_ref[:, 0:1])     # (TR, 2*KPAD)
    onehot = (k == target).astype(jnp.float32)
    pos = jnp.dot(onehot, wpe_ref[...], preferred_element_type=jnp.float32)

    # Single full-width (128-lane) store: obs/pos halves already land in
    # disjoint lane ranges via the block-diagonal weights -> no concatenate.
    out_ref[...] = (obs + pos + bias_ref[...]).astype(out_ref.dtype)


def make_pe_table(d_model: int, max_len: int = MAX_LEN) -> jnp.ndarray:
    """Standard sinusoidal table: pe[pos, 2i]=sin, pe[pos, 2i+1]=cos."""
    position = jnp.arange(max_len, dtype=jnp.float32)[:, None]          # (L, 1)
    div_term = jnp.exp(
        jnp.arange(0, d_model, 2, dtype=jnp.float32)
        * (-math.log(10000.0) / d_model))                               # (E/2,)
    pe = jnp.zeros((max_len, d_model), dtype=jnp.float32)
    pe = pe.at[:, 0::2].set(jnp.sin(position * div_term))
    pe = pe.at[:, 1::2].set(jnp.cos(position * div_term))
    return pe


@functools.partial(jax.jit, static_argnames=("row_tile",))
def bert_embedding(input_sequence, doy_sequence, w_t, b, pe, *, row_tile=1024):
    """input_sequence: (B, S, F) f32; doy_sequence: (B, S) int -> (B, S, 2E) f32.

    row_tile = packed rows per grid step (each packed row = PACK logical rows).
    """
    B, S, F = input_sequence.shape
    E = w_t.shape[1]
    R = B * S
    P = PACK
    W_OUT = 2 * P * E                                  # 4E (=128 for E=32)

    # ---- fused block-diagonal weights (tiny, resident in VMEM) ----
    pe_pad = jnp.zeros((KPAD, E), jnp.float32).at[:pe.shape[0]].set(pe)

    wx_big = jnp.zeros((P * F, W_OUT), jnp.float32)
    wx_big = wx_big.at[0:F, 0:E].set(w_t)
    wx_big = wx_big.at[F:2 * F, 2 * E:3 * E].set(w_t)

    wpe_big = jnp.zeros((P * KPAD, W_OUT), jnp.float32)
    wpe_big = wpe_big.at[0:KPAD, E:2 * E].set(pe_pad)
    wpe_big = wpe_big.at[KPAD:, 3 * E:4 * E].set(pe_pad)

    bias_row = jnp.zeros((1, W_OUT), jnp.float32)
    bias_row = bias_row.at[0, 0:E].set(b)
    bias_row = bias_row.at[0, 2 * E:3 * E].set(b)

    # ---- pack rows pairwise and pad to a tile multiple ----
    n_pack = -(-R // P)                                 # ceil(R / P)
    tile = min(row_tile, _round_up(n_pack, 8))
    tile = _round_up(tile, 8)
    n_pad = _round_up(n_pack, tile)
    r_pad = n_pad * P

    x2d = input_sequence.reshape(R, F)
    doy1d = doy_sequence.reshape(R).astype(jnp.int32)
    if r_pad != R:
        x2d = jnp.pad(x2d, ((0, r_pad - R), (0, 0)))
        doy1d = jnp.pad(doy1d, (0, r_pad - R))
    x_packed = x2d.reshape(n_pad, P * F)
    doy_packed = doy1d.reshape(n_pad, P)

    out_packed = pl.pallas_call(
        functools.partial(bert_embedding_kernel, kpad=KPAD),
        out_shape=jax.ShapeDtypeStruct((n_pad, W_OUT), jnp.float32),
        grid_spec=pltpu.PrefetchScalarGridSpec(
            num_scalar_prefetch=0,
            grid=(n_pad // tile,),
            in_specs=[
                pl.BlockSpec((tile, P * F), lambda i: (i, 0)),        # packed x
                pl.BlockSpec((tile, P), lambda i: (i, 0)),            # packed doy
                pl.BlockSpec((P * F, W_OUT), lambda i: (0, 0)),       # wx (resident)
                pl.BlockSpec((P * KPAD, W_OUT), lambda i: (0, 0)),    # wpe (resident)
                pl.BlockSpec((1, W_OUT), lambda i: (0, 0)),           # bias (resident)
            ],
            out_specs=pl.BlockSpec((tile, W_OUT), lambda i: (i, 0)),
        ),
        compiler_params=pltpu.CompilerParams(
            dimension_semantics=("parallel",)),
    )(x_packed, doy_packed, wx_big, wpe_big, bias_row)

    out2d = out_packed.reshape(r_pad, 2 * E)[:R]

    # TODO(synk): nn.Dropout(p=0.1) is identity in eval mode; training-mode
    # stochastic dropout (pltpu.prng_seed / prng_random_bits) not implemented.
    return out2d.reshape(B, S, 2 * E)


def _reference(input_sequence, doy_sequence, w_t, b, pe):
    obs_ref = input_sequence @ w_t + b
    pos_ref = pe[doy_sequence]
    return jnp.concatenate([obs_ref, pos_ref], axis=-1)


if __name__ == "__main__":
    # Small shapes consistent with the module's forward.
    F = 4                 # num_features (satellite bands)
    E = 32                # embedding_dim  -> output last dim = 2*E = 64

    key = jax.random.PRNGKey(0)
    k_x, k_doy, k_w, k_b, k_x2, k_doy2 = jax.random.split(key, 6)

    # Deterministic parameter init (nn.Linear(F, E)): weight stored transposed (F, E).
    bound = 1.0 / math.sqrt(F)
    w_t = jax.random.uniform(k_w, (F, E), jnp.float32, -bound, bound)
    b = jax.random.uniform(k_b, (E,), jnp.float32, -bound, bound)
    pe = make_pe_table(E, MAX_LEN)

    # --- case 1: tiny (single grid step) ---
    B, S = 2, 8
    x1 = jax.random.normal(k_x, (B, S, F), dtype=jnp.float32)
    d1 = jax.random.randint(k_doy, (B, S), 1, MAX_LEN, dtype=jnp.int32)
    out1 = jax.block_until_ready(bert_embedding(x1, d1, w_t, b, pe))
    ref1 = _reference(x1, d1, w_t, b, pe)
    assert out1.shape == (B, S, 2 * E), out1.shape
    assert jnp.allclose(out1, ref1, atol=1e-5, rtol=1e-5), float(jnp.abs(out1 - ref1).max())

    # --- case 2: ragged row count + multi-step grid (exercises padding path) ---
    B2, S2 = 3, 50        # B*S = 150 (odd, not a tile multiple)
    x2 = jax.random.normal(k_x2, (B2, S2, F), dtype=jnp.float32)
    d2 = jax.random.randint(k_doy2, (B2, S2), 1, MAX_LEN, dtype=jnp.int32)
    out2 = jax.block_until_ready(bert_embedding(x2, d2, w_t, b, pe, row_tile=16))
    ref2 = _reference(x2, d2, w_t, b, pe)
    assert out2.shape == (B2, S2, 2 * E), out2.shape
    assert jnp.allclose(out2, ref2, atol=1e-5, rtol=1e-5), float(jnp.abs(out2 - ref2).max())

    print("KERNEL_OK")
</pallas_src>

<mosaic_0001>
module attributes {stable_mosaic.version = 11 : i64} {
  func.func @bert_embedding_kernel(%arg0: i32, %arg1: memref<8x8xf32, #tpu.memory_space<vmem>>, %arg2: memref<8x2xi32, #tpu.memory_space<vmem>>, %arg3: memref<8x128xf32, #tpu.memory_space<vmem>>, %arg4: memref<768x128xf32, #tpu.memory_space<vmem>>, %arg5: memref<1x128xf32, #tpu.memory_space<vmem>>, %arg6: memref<8x128xf32, #tpu.memory_space<vmem>>) attributes {dimension_semantics = [#tpu.dimension_semantics<parallel>], iteration_bounds = array<i64: 1>, scalar_prefetch = 0 : i64, scratch_operands = 0 : i64, tpu.core_type = #tpu.core_type<tc>, window_params = [{transform_indices = @transform_0, window_bounds = array<i64: 8, 8>}, {transform_indices = @transform_1, window_bounds = array<i64: 8, 2>}, {pipeline_mode = #tpu.pipeline_mode<synchronous>, transform_indices = @transform_2, window_bounds = array<i64: 8, 128>}, {pipeline_mode = #tpu.pipeline_mode<synchronous>, transform_indices = @transform_3, window_bounds = array<i64: 768, 128>}, {pipeline_mode = #tpu.pipeline_mode<synchronous>, transform_indices = @transform_4, window_bounds = array<i64: 1, 128>}, {transform_indices = @transform_5, window_bounds = array<i64: 8, 128>}]} {
    %c0 = arith.constant 0 : index
    %c0_0 = arith.constant 0 : index
    %0 = vector.load %arg1[%c0, %c0_0] : memref<8x8xf32, #tpu.memory_space<vmem>>, vector<8x8xf32>
    %c0_1 = arith.constant 0 : index
    %c0_2 = arith.constant 0 : index
    %1 = vector.load %arg3[%c0_1, %c0_2] : memref<8x128xf32, #tpu.memory_space<vmem>>, vector<8x128xf32>
    %cst = arith.constant dense<0.000000e+00> : vector<8x128xf32>
    %2 = tpu.matmul %0, %1, %cst {dimension_numbers = #tpu.dot_dimension_numbers<[1], [0], [0], [1], [0, 0, 1, 1], [], []>} : vector<8x8xf32>, vector<8x128xf32>, vector<8x128xf32> -> vector<8x128xf32>
    %3 = tpu.iota {dimensions = array<i32: 1>} : vector<8x768xi32>
    %c384_i32 = arith.constant 384 : i32
    %4 = vector.broadcast %c384_i32 : i32 to vector<8x768xi32>
    %5 = arith.cmpi sge, %3, %4 : vector<8x768xi32>
    %c384_i32_3 = arith.constant 384 : i32
    %c0_i32 = arith.constant 0 : i32
    %6 = vector.broadcast %c384_i32_3 : i32 to vector<8x768xi32>
    %7 = vector.broadcast %c0_i32 : i32 to vector<8x768xi32>
    %8 = arith.select %5, %6, %7 : vector<8x768xi1>, vector<8x768xi32>
    %9 = arith.subi %3, %8 : vector<8x768xi32>
    %c0_4 = arith.constant 0 : index
    %c1 = arith.constant 1 : index
    %10 = vector.load %arg2[%c0_4, %c1] : memref<8x2xi32, #tpu.memory_space<vmem>>, vector<8x1xi32>
    %c0_5 = arith.constant 0 : index
    %c0_6 = arith.constant 0 : index
    %11 = vector.load %arg2[%c0_5, %c0_6] : memref<8x2xi32, #tpu.memory_space<vmem>>, vector<8x1xi32>
    %12 = vector.shape_cast %10 : vector<8x1xi32> to vector<8x1xi32>
    %13 = vector.broadcast %12 : vector<8x1xi32> to vector<8x768xi32>
    %14 = vector.shape_cast %11 : vector<8x1xi32> to vector<8x1xi32>
    %15 = vector.broadcast %14 : vector<8x1xi32> to vector<8x768xi32>
    %16 = arith.select %5, %13, %15 : vector<8x768xi1>, vector<8x768xi32>
    %17 = arith.cmpi eq, %9, %16 : vector<8x768xi32>
    %18 = arith.extui %17 : vector<8x768xi1> to vector<8x768xi32>
    %19 = arith.sitofp %18 : vector<8x768xi32> to vector<8x768xf32>
    %c0_7 = arith.constant 0 : index
    %c0_8 = arith.constant 0 : index
    %20 = vector.load %arg4[%c0_7, %c0_8] : memref<768x128xf32, #tpu.memory_space<vmem>>, vector<768x128xf32>
    %cst_9 = arith.constant dense<0.000000e+00> : vector<8x128xf32>
    %21 = tpu.matmul %19, %20, %cst_9 {dimension_numbers = #tpu.dot_dimension_numbers<[1], [0], [0], [1], [0, 0, 1, 1], [], []>} : vector<8x768xf32>, vector<768x128xf32>, vector<8x128xf32> -> vector<8x128xf32>
    %22 = arith.addf %2, %21 : vector<8x128xf32>
    %c0_10 = arith.constant 0 : index
    %c0_11 = arith.constant 0 : index
    %23 = vector.load %arg5[%c0_10, %c0_11] : memref<1x128xf32, #tpu.memory_space<vmem>>, vector<1x128xf32>
    %24 = vector.broadcast %23 : vector<1x128xf32> to vector<8x128xf32>
    %25 = arith.addf %22, %24 : vector<8x128xf32>
    %c0_12 = arith.constant 0 : index
    %c0_13 = arith.constant 0 : index
    %26 = vector.load %arg6[%c0_12, %c0_13] : memref<8x128xf32, #tpu.memory_space<vmem>>, vector<8x128xf32>
    tpu.vector_store %arg6[%c0_12, %c0_13], %25 {strides = array<i32>} : memref<8x128xf32, #tpu.memory_space<vmem>>, vector<8x128xf32>,
    return
  }
  func.func @transform_0(%arg0: i32) -> (i32, i32) {
    %c0_i32 = arith.constant 0 : i32
    %c0_i32_0 = arith.constant 0 : i32
    return %arg0, %c0_i32 : i32, i32
  }
  func.func @transform_1(%arg0: i32) -> (i32, i32) {
    %c0_i32 = arith.constant 0 : i32
    %c0_i32_0 = arith.constant 0 : i32
    return %arg0, %c0_i32 : i32, i32
  }
  func.func @transform_2(%arg0: i32) -> (i32, i32) {
    %c0_i32 = arith.constant 0 : i32
    %c0_i32_0 = arith.constant 0 : i32
    %c0_i32_1 = arith.constant 0 : i32
    return %c0_i32, %c0_i32_0 : i32, i32
  }
  func.func @transform_3(%arg0: i32) -> (i32, i32) {
    %c0_i32 = arith.constant 0 : i32
    %c0_i32_0 = arith.constant 0 : i32
    %c0_i32_1 = arith.constant 0 : i32
    return %c0_i32, %c0_i32_0 : i32, i32
  }
  func.func @transform_4(%arg0: i32) -> (i32, i32) {
    %c0_i32 = arith.constant 0 : i32
    %c0_i32_0 = arith.constant 0 : i32
    %c0_i32_1 = arith.constant 0 : i32
    return %c0_i32, %c0_i32_0 : i32, i32
  }
  func.func @transform_5(%arg0: i32) -> (i32, i32) {
    %c0_i32 = arith.constant 0 : i32
    %c0_i32_0 = arith.constant 0 : i32
    return %arg0, %c0_i32 : i32, i32
  }
}

</mosaic_0001>

<llo_original>
// kernel: bert_embedding.1
$region0: #{bert_embedding.1}
  #allocation0 [shape = 'u32[]', space=smem, size = 0x4, offset = 0x4, fixed_abs, tag = 'smem constant byte address 0x4 - core index']
  #allocation1 [shape = 'u32[144,128]{1,0:T(1,128)}', space=vmem, size = 0x12000, scoped, tag = 'internal scratch']
  %s0 = inlined_call_operand.vmem [shape: f32[8,8], index: 0, kind: input, shape index: {}]
  %s1 = inlined_call_operand.vmem [shape: s32[8,2], index: 1, kind: input, shape index: {}]
  %s2 = inlined_call_operand.vmem [shape: f32[8,128], index: 2, kind: input, shape index: {}]
  %s3 = inlined_call_operand.vmem [shape: f32[768,128], index: 3, kind: input, shape index: {}]
  %s4 = inlined_call_operand.vmem [shape: f32[1,128], index: 4, kind: input, shape index: {}]
  %s5 = inlined_call_operand.vmem [shape: f32[8,128], index: 5, kind: output, shape index: {}]
  %s6 = sld [smem:[#allocation0]]
  $region30: #{bert_embedding.1} parent=0
    _
  %s8 = ssub.s32 1, %s6
  %s9 = scalar_select 0, %s8, %s6
  // Predicated region
  $region2: #{bert_embedding.1} parent=0 // pred_check
    _
  $region3: #{bert_embedding.1} parent=0 // pred_check_branch
    %11 = sbr.rel (0) target = $region5
  $region4: #{bert_embedding.1} parent=0 // pred_region
    _
  $region5: #{bert_embedding.1} parent=0 // pred_fallthru
    _
  // Predicated region
  $region6: #{bert_embedding.1} parent=0 // pred_check
    _
  $region7: #{bert_embedding.1} parent=0 // pred_check_branch
    %13 = sbr.rel (0) target = $region9
  $region8: #{bert_embedding.1} parent=0 // pred_region
    _
  $region9: #{bert_embedding.1} parent=0 // pred_fallthru
    _
  // Predicated region
  $region10: #{bert_embedding.1} parent=0 // pred_check
    _
  $region11: #{bert_embedding.1} parent=0 // pred_check_branch
    %15 = sbr.rel (0) target = $region13
  $region12: #{bert_embedding.1} parent=0 // pred_region
    _
  $region13: #{bert_embedding.1} parent=0 // pred_fallthru
    _
  // Predicated region
  $region14: #{bert_embedding.1} parent=0 // pred_check
    _
  $region15: #{bert_embedding.1} parent=0 // pred_check_branch
    %17 = sbr.rel (0) target = $region17
  $region16: #{bert_embedding.1} parent=0 // pred_region
    _
  $region17: #{bert_embedding.1} parent=0 // pred_fallthru
    _
  // Predicated region
  $region18: #{bert_embedding.1} parent=0 // pred_check
    _
  $region19: #{bert_embedding.1} parent=0 // pred_check_branch
    %19 = sbr.rel (0) target = $region21
  $region20: #{bert_embedding.1} parent=0 // pred_region
    _
  $region21: #{bert_embedding.1} parent=0 // pred_fallthru
    _
  %v20 = vld [vmem:[%s0] sm:$0xff]
  %v21 = vld [vmem:[%s2] sm:$0xff]
  %v22 = vlaneseq
  %v23 = vand.u32 %v22, 127
  %v24 = vadd.s32 %v23, 128
  %v25 = vadd.s32 %v23, 256
  %v26 = vadd.s32 %v23, 384
  %v27 = vadd.s32 %v23, 512
  %v28 = vadd.s32 %v23, 640
  %vm29 = vcmp.ge.s32.totalorder %v23, 384
  %vm30 = vcmp.ge.s32.totalorder %v24, 384
  %vm31 = vcmp.ge.s32.totalorder %v25, 384
  %vm32 = vcmp.ge.s32.totalorder %v26, 384
  %vm33 = vcmp.ge.s32.totalorder %v27, 384
  %vm34 = vcmp.ge.s32.totalorder %v28, 384
  %v35 = vsel %vm29, 384, 0
  %v36 = vsel %vm30, 384, 0
  %v37 = vsel %vm31, 384, 0
  %v38 = vsel %vm32, 384, 0
  %v39 = vsel %vm33, 384, 0
  %v40 = vsel %vm34, 384, 0
  %v41 = vsub.s32 %v23, %v35
  %v42 = vsub.s32 %v24, %v36
  %v43 = vsub.s32 %v25, %v37
  %v44 = vsub.s32 %v26, %v38
  %v45 = vsub.s32 %v27, %v39
  %v46 = vsub.s32 %v28, %v40
  %v47 = vld [vmem:[%s1] sm:$0xff]
  %48 = vset.pattern.permute.xlu0 1
  %49 = vperm.xlu0 %48, %v47
  %v50 = vpop.permute.xlu0 %49
  %51 = vset.pattern.permute.xlu0 0
  %52 = vperm.xlu0 %51, %v47
  %v53 = vpop.permute.xlu0 %52
  %v54 = vsel %vm29, %v50, %v53
  %v55 = vsel %vm30, %v50, %v53
  %v56 = vsel %vm31, %v50, %v53
  %v57 = vsel %vm32, %v50, %v53
  %v58 = vsel %vm33, %v50, %v53
  %v59 = vsel %vm34, %v50, %v53
  %vm60 = vcmp.eq.s32.totalorder %v41, %v54
  %vm61 = vcmp.eq.s32.totalorder %v42, %v55
  %vm62 = vcmp.eq.s32.totalorder %v43, %v56
  %vm63 = vcmp.eq.s32.totalorder %v44, %v57
  %vm64 = vcmp.eq.s32.totalorder %v45, %v58
  %vm65 = vcmp.eq.s32.totalorder %v46, %v59
  %v66 = vsel %vm60, 1, 0
  %v67 = vsel %vm61, 1, 0
  %v68 = vsel %vm62, 1, 0
  %v69 = vsel %vm63, 1, 0
  %v70 = vsel %vm64, 1, 0
  %v71 = vsel %vm65, 1, 0
  %v72 = vcvt.s32.f32 %v66
  %v73 = vcvt.s32.f32 %v67
  %v74 = vcvt.s32.f32 %v68
  %v75 = vcvt.s32.f32 %v69
  %v76 = vcvt.s32.f32 %v70
  %v77 = vcvt.s32.f32 %v71
  %v78 = vld [vmem:[%s3] sm:$0xff]
  %v79 = vld [vmem:[%s3 + $0x8] sm:$0xff]
  %v80 = vld [vmem:[%s3 + $0x10] sm:$0xff]
  %v81 = vld [vmem:[%s3 + $0x18] sm:$0xff]
  %v82 = vld [vmem:[%s3 + $0x20] sm:$0xff]
  %v83 = vld [vmem:[%s3 + $0x28] sm:$0xff]
  %v84 = vld [vmem:[%s3 + $0x30] sm:$0xff]
  %v85 = vld [vmem:[%s3 + $0x38] sm:$0xff]
  %v86 = vld [vmem:[%s3 + $0x40] sm:$0xff]
  %v87 = vld [vmem:[%s3 + $0x48] sm:$0xff]
  %v88 = vld [vmem:[%s3 + $0x50] sm:$0xff]
  %v89 = vld [vmem:[%s3 + $0x58] sm:$0xff]
  %v90 = vld [vmem:[%s3 + $0x60] sm:$0xff]
  %v91 = vld [vmem:[%s3 + $0x68] sm:$0xff]
  %v92 = vld [vmem:[%s3 + $0x70] sm:$0xff]
  %v93 = vld [vmem:[%s3 + $0x78] sm:$0xff]
  %v94 = vld [vmem:[%s3 + $0x80] sm:$0xff]
  %v95 = vld [vmem:[%s3 + $0x88] sm:$0xff]
  %v96 = vld [vmem:[%s3 + $0x90] sm:$0xff]
  %v97 = vld [vmem:[%s3 + $0x98] sm:$0xff]
  %v98 = vld [vmem:[%s3 + $0xa0] sm:$0xff]
  %v99 = vld [vmem:[%s3 + $0xa8] sm:$0xff]
  %v100 = vld [vmem:[%s3 + $0xb0] sm:$0xff]
  %v101 = vld [vmem:[%s3 + $0xb8] sm:$0xff]
  %v102 = vld [vmem:[%s3 + $0xc0] sm:$0xff]
  %v103 = vld [vmem:[%s3 + $0xc8] sm:$0xff]
  %v104 = vld [vmem:[%s3 + $0xd0] sm:$0xff]
  %v105 = vld [vmem:[%s3 + $0xd8] sm:$0xff]
  %v106 = vld [vmem:[%s3 + $0xe0] sm:$0xff]
  %v107 = vld [vmem:[%s3 + $0xe8] sm:$0xff]
  %v108 = vld [vmem:[%s3 + $0xf0] sm:$0xff]
  %v109 = vld [vmem:[%s3 + $0xf8] sm:$0xff]
  %v110 = vld [vmem:[%s3 + $0x100] sm:$0xff]
  %v111 = vld [vmem:[%s3 + $0x108] sm:$0xff]
  %v112 = vld [vmem:[%s3 + $0x110] sm:$0xff]
  %v113 = vld [vmem:[%s3 + $0x118] sm:$0xff]
  %v114 = vld [vmem:[%s3 + $0x120] sm:$0xff]
  %v115 = vld [vmem:[%s3 + $0x128] sm:$0xff]
  %v116 = vld [vmem:[%s3 + $0x130] sm:$0xff]
  %v117 = vld [vmem:[%s3 + $0x138] sm:$0xff]
  %v118 = vld [vmem:[%s3 + $0x140] sm:$0xff]
  %v119 = vld [vmem:[%s3 + $0x148] sm:$0xff]
  %v120 = vld [vmem:[%s3 + $0x150] sm:$0xff]
  %v121 = vld [vmem:[%s3 + $0x158] sm:$0xff]
  %v122 = vld [vmem:[%s3 + $0x160] sm:$0xff]
  %v123 = vld [vmem:[%s3 + $0x168] sm:$0xff]
  %v124 = vld [vmem:[%s3 + $0x170] sm:$0xff]
  %v125 = vld [vmem:[%s3 + $0x178] sm:$0xff]
  %v126 = vld [vmem:[%s3 + $0x180] sm:$0xff]
  %v127 = vld [vmem:[%s3 + $0x188] sm:$0xff]
  %v128 = vld [vmem:[%s3 + $0x190] sm:$0xff]
  %v129 = vld [vmem:[%s3 + $0x198] sm:$0xff]
  %v130 = vld [vmem:[%s3 + $0x1a0] sm:$0xff]
  %v131 = vld [vmem:[%s3 + $0x1a8] sm:$0xff]
  %v132 = vld [vmem:[%s3 + $0x1b0] sm:$0xff]
  %v133 = vld [vmem:[%s3 + $0x1b8] sm:$0xff]
  %v134 = vld [vmem:[%s3 + $0x1c0] sm:$0xff]
  %v135 = vld [vmem:[%s3 + $0x1c8] sm:$0xff]
  %v136 = vld [vmem:[%s3 + $0x1d0] sm:$0xff]
  %v137 = vld [vmem:[%s3 + $0x1d8] sm:$0xff]
  %v138 = vld [vmem:[%s3 + $0x1e0] sm:$0xff]
  %v139 = vld [vmem:[%s3 + $0x1e8] sm:$0xff]
  %v140 = vld [vmem:[%s3 + $0x1f0] sm:$0xff]
  %v141 = vld [vmem:[%s3 + $0x1f8] sm:$0xff]
  %v142 = vld [vmem:[%s3 + $0x200] sm:$0xff]
  %v143 = vld [vmem:[%s3 + $0x208] sm:$0xff]
  %v144 = vld [vmem:[%s3 + $0x210] sm:$0xff]
  %v145 = vld [vmem:[%s3 + $0x218] sm:$0xff]
  %v146 = vld [vmem:[%s3 + $0x220] sm:$0xff]
  %v147 = vld [vmem:[%s3 + $0x228] sm:$0xff]
  %v148 = vld [vmem:[%s3 + $0x230] sm:$0xff]
  %v149 = vld [vmem:[%s3 + $0x238] sm:$0xff]
  %v150 = vld [vmem:[%s3 + $0x240] sm:$0xff]
  %v151 = vld [vmem:[%s3 + $0x248] sm:$0xff]
  %v152 = vld [vmem:[%s3 + $0x250] sm:$0xff]
  %v153 = vld [vmem:[%s3 + $0x258] sm:$0xff]
  %v154 = vld [vmem:[%s3 + $0x260] sm:$0xff]
  %v155 = vld [vmem:[%s3 + $0x268] sm:$0xff]
  %v156 = vld [vmem:[%s3 + $0x270] sm:$0xff]
  %v157 = vld [vmem:[%s3 + $0x278] sm:$0xff]
  %v158 = vld [vmem:[%s3 + $0x280] sm:$0xff]
  %v159 = vld [vmem:[%s3 + $0x288] sm:$0xff]
  %v160 = vld [vmem:[%s3 + $0x290] sm:$0xff]
  %v161 = vld [vmem:[%s3 + $0x298] sm:$0xff]
  %v162 = vld [vmem:[%s3 + $0x2a0] sm:$0xff]
  %v163 = vld [vmem:[%s3 + $0x2a8] sm:$0xff]
  %v164 = vld [vmem:[%s3 + $0x2b0] sm:$0xff]
  %v165 = vld [vmem:[%s3 + $0x2b8] sm:$0xff]
  %v166 = vld [vmem:[%s3 + $0x2c0] sm:$0xff]
  %v167 = vld [vmem:[%s3 + $0x2c8] sm:$0xff]
  %v168 = vld [vmem:[%s3 + $0x2d0] sm:$0xff]
  %v169 = vld [vmem:[%s3 + $0x2d8] sm:$0xff]
  %v170 = vld [vmem:[%s3 + $0x2e0] sm:$0xff]
  %v171 = vld [vmem:[%s3 + $0x2e8] sm:$0xff]
  %v172 = vld [vmem:[%s3 + $0x2f0] sm:$0xff]
  %v173 = vld [vmem:[%s3 + $0x2f8] sm:$0xff]
  %174 = vmatprep.subr.mxu0 0.0
  %175 = vmatpush1.msra.mxu0 %v93
  %176 = vmatprep.subr.mxu0 0.0
  %177 = vmatpush1.msra.mxu0 %v92
  %178 = vmatprep.subr.mxu0 0.0
  %179 = vmatpush1.msra.mxu0 %v91
  %180 = vmatprep.subr.mxu0 0.0
  %181 = vmatpush1.msra.mxu0 %v90
  %182 = vmatprep.subr.mxu0 0.0
  %183 = vmatpush1.msra.mxu0 %v89
  %184 = vmatprep.subr.mxu0 0.0
  %185 = vmatpush1.msra.mxu0 %v88
  %186 = vmatprep.subr.mxu0 0.0
  %187 = vmatpush1.msra.mxu0 %v87
  %188 = vmatprep.subr.mxu0 0.0
  %189 = vmatpush1.msra.mxu0 %v86
  %190 = vmatprep.subr.mxu0 0.0
  %191 = vmatpush1.msra.mxu0 %v85
  %192 = vmatprep.subr.mxu0 0.0
  %193 = vmatpush1.msra.mxu0 %v84
  %194 = vmatprep.subr.mxu0 0.0
  %195 = vmatpush1.msra.mxu0 %v83
  %196 = vmatprep.subr.mxu0 0.0
  %197 = vmatpush1.msra.mxu0 %v82
  %198 = vmatprep.subr.mxu0 0.0
  %199 = vmatpush1.msra.mxu0 %v81
  %200 = vmatprep.subr.mxu0 0.0
  %201 = vmatpush1.msra.mxu0 %v80
  %202 = vmatprep.subr.mxu0 0.0
  %203 = vmatpush1.msra.mxu0 %v79
  %204 = vmatprep.subr.mxu0 0.0
  %205 = vmatpush1.msra.mxu0 %v78
  %206 = vmatprep.subr.mxu0 0.0
  %207 = vmatpush2.msra.mxu0 %v109
  %208 = vmatprep.subr.mxu0 0.0
  %209 = vmatpush2.msra.mxu0 %v108
  %210 = vmatprep.subr.mxu0 0.0
  %211 = vmatpush2.msra.mxu0 %v107
  %212 = vmatprep.subr.mxu0 0.0
  %213 = vmatpush2.msra.mxu0 %v106
  %214 = vmatprep.subr.mxu0 0.0
  %215 = vmatpush2.msra.mxu0 %v105
  %216 = vmatprep.subr.mxu0 0.0
  %217 = vmatpush2.msra.mxu0 %v104
  %218 = vmatprep.subr.mxu0 0.0
  %219 = vmatpush2.msra.mxu0 %v103
  %220 = vmatprep.subr.mxu0 0.0
  %221 = vmatpush2.msra.mxu0 %v102
  %222 = vmatprep.subr.mxu0 0.0
  %223 = vmatpush2.msra.mxu0 %v101
  %224 = vmatprep.subr.mxu0 0.0
  %225 = vmatpush2.msra.mxu0 %v100
  %226 = vmatprep.subr.mxu0 0.0
  %227 = vmatpush2.msra.mxu0 %v99
  %228 = vmatprep.subr.mxu0 0.0
  %229 = vmatpush2.msra.mxu0 %v98
  %230 = vmatprep.subr.mxu0 0.0
  %231 = vmatpush2.msra.mxu0 %v97
  %232 = vmatprep.subr.mxu0 0.0
  %233 = vmatpush2.msra.mxu0 %v96
  %234 = vmatprep.subr.mxu0 0.0
  %235 = vmatpush2.msra.mxu0 %v95
  %236 = vmatprep.subr.mxu0 0.0
  %237 = vmatpush2.msra.mxu0 %v94
  %238 = vmatprep.mubr.f32.mxu0 %v73
  %239 = vmatmul.mubr.f32.gmra.mxu0 %v72
  %v240 = vpop.f32.mrf.mxu0
  %v241 = vadd.f32 0.0, %v240
  %v242 = vpop.f32.mrf.mxu0
  %243 = vdwg.mxu0
  %244 = vmatprep.subr.mxu0 0.0
  %245 = vmatpush1.msra.mxu0 %v125
  %246 = vmatprep.subr.mxu0 0.0
  %247 = vmatpush1.msra.mxu0 %v124
  %248 = vmatprep.subr.mxu0 0.0
  %249 = vmatpush1.msra.mxu0 %v123
  %250 = vmatprep.subr.mxu0 0.0
  %251 = vmatpush1.msra.mxu0 %v122
  %252 = vmatprep.subr.mxu0 0.0
  %253 = vmatpush1.msra.mxu0 %v121
  %254 = vmatprep.subr.mxu0 0.0
  %255 = vmatpush1.msra.mxu0 %v120
  %256 = vmatprep.subr.mxu0 0.0
  %257 = vmatpush1.msra.mxu0 %v119
  %258 = vmatprep.subr.mxu0 0.0
  %259 = vmatpush1.msra.mxu0 %v118
  %260 = vmatprep.subr.mxu0 0.0
  %261 = vmatpush1.msra.mxu0 %v117
  %262 = vmatprep.subr.mxu0 0.0
  %263 = vmatpush1.msra.mxu0 %v116
  %264 = vmatprep.subr.mxu0 0.0
  %265 = vmatpush1.msra.mxu0 %v115
  %266 = vmatprep.subr.mxu0 0.0
  %267 = vmatpush1.msra.mxu0 %v114
  %268 = vmatprep.subr.mxu0 0.0
  %269 = vmatpush1.msra.mxu0 %v113
  %270 = vmatprep.subr.mxu0 0.0
  %271 = vmatpush1.msra.mxu0 %v112
  %272 = vmatprep.subr.mxu0 0.0
  %273 = vmatpush1.msra.mxu0 %v111
  %274 = vmatprep.subr.mxu0 0.0
  %275 = vmatpush1.msra.mxu0 %v110
  %276 = vmatprep.subr.mxu0 0.0
  %277 = vmatpush2.msra.mxu0 %v141
  %278 = vmatprep.subr.mxu0 0.0
  %279 = vmatpush2.msra.mxu0 %v140
  %280 = vmatprep.subr.mxu0 0.0
  %281 = vmatpush2.msra.mxu0 %v139
  %282 = vmatprep.subr.mxu0 0.0
  %283 = vmatpush2.msra.mxu0 %v138
  %284 = vmatprep.subr.mxu0 0.0
  %285 = vmatpush2.msra.mxu0 %v137
  %286 = vmatprep.subr.mxu0 0.0
  %287 = vmatpush2.msra.mxu0 %v136
  %288 = vmatprep.subr.mxu0 0.0
  %289 = vmatpush2.msra.mxu0 %v135
  %290 = vmatprep.subr.mxu0 0.0
  %291 = vmatpush2.msra.mxu0 %v134
  %292 = vmatprep.subr.mxu0 0.0
  %293 = vmatpush2.msra.mxu0 %v133
  %294 = vmatprep.subr.mxu0 0.0
  %295 = vmatpush2.msra.mxu0 %v132
  %296 = vmatprep.subr.mxu0 0.0
  %297 = vmatpush2.msra.mxu0 %v131
  %298 = vmatprep.subr.mxu0 0.0
  %299 = vmatpush2.msra.mxu0 %v130
  %300 = vmatprep.subr.mxu0 0.0
  %301 = vmatpush2.msra.mxu0 %v129
  %302 = vmatprep.subr.mxu0 0.0
  %303 = vmatpush2.msra.mxu0 %v128
  %304 = vmatprep.subr.mxu0 0.0
  %305 = vmatpush2.msra.mxu0 %v127
  %306 = vmatprep.subr.mxu0 0.0
  %307 = vmatpush2.msra.mxu0 %v126
  %308 = vmatprep.mubr.f32.mxu0 %v75
  %309 = vmatmul.mubr.f32.gmra.mxu0 %v74
  %v310 = vpop.f32.mrf.mxu0
  %v311 = vadd.f32 %v241, %v310
  %v312 = vpop.f32.mrf.mxu0
  %313 = vdwg.mxu0
  %314 = vmatprep.subr.mxu0 0.0
  %315 = vmatpush1.msra.mxu0 %v157
  %316 = vmatprep.subr.mxu0 0.0
  %317 = vmatpush1.msra.mxu0 %v156
  %318 = vmatprep.subr.mxu0 0.0
  %319 = vmatpush1.msra.mxu0 %v155
  %320 = vmatprep.subr.mxu0 0.0
  %321 = vmatpush1.msra.mxu0 %v154
  %322 = vmatprep.subr.mxu0 0.0
  %323 = vmatpush1.msra.mxu0 %v153
  %324 = vmatprep.subr.mxu0 0.0
  %325 = vmatpush1.msra.mxu0 %v152
  %326 = vmatprep.subr.mxu0 0.0
  %327 = vmatpush1.msra.mxu0 %v151
  %328 = vmatprep.subr.mxu0 0.0
  %329 = vmatpush1.msra.mxu0 %v150
  %330 = vmatprep.subr.mxu0 0.0
  %331 = vmatpush1.msra.mxu0 %v149
  %332 = vmatprep.subr.mxu0 0.0
  %333 = vmatpush1.msra.mxu0 %v148
  %334 = vmatprep.subr.mxu0 0.0
  %335 = vmatpush1.msra.mxu0 %v147
  %336 = vmatprep.subr.mxu0 0.0
  %337 = vmatpush1.msra.mxu0 %v146
  %338 = vmatprep.subr.mxu0 0.0
  %339 = vmatpush1.msra.mxu0 %v145
  %340 = vmatprep.subr.mxu0 0.0
  %341 = vmatpush1.msra.mxu0 %v144
  %342 = vmatprep.subr.mxu0 0.0
  %343 = vmatpush1.msra.mxu0 %v143
  %344 = vmatprep.subr.mxu0 0.0
  %345 = vmatpush1.msra.mxu0 %v142
  %346 = vmatprep.subr.mxu0 0.0
  %347 = vmatpush2.msra.mxu0 %v173
  %348 = vmatprep.subr.mxu0 0.0
  %349 = vmatpush2.msra.mxu0 %v172
  %350 = vmatprep.subr.mxu0 0.0
  %351 = vmatpush2.msra.mxu0 %v171
  %352 = vmatprep.subr.mxu0 0.0
  %353 = vmatpush2.msra.mxu0 %v170
  %354 = vmatprep.subr.mxu0 0.0
  %355 = vmatpush2.msra.mxu0 %v169
  %356 = vmatprep.subr.mxu0 0.0
  %357 = vmatpush2.msra.mxu0 %v168
  %358 = vmatprep.subr.mxu0 0.0
  %359 = vmatpush2.msra.mxu0 %v167
  %360 = vmatprep.subr.mxu0 0.0
  %361 = vmatpush2.msra.mxu0 %v166
  %362 = vmatprep.subr.mxu0 0.0
  %363 = vmatpush2.msra.mxu0 %v165
  %364 = vmatprep.subr.mxu0 0.0
  %365 = vmatpush2.msra.mxu0 %v164
  %366 = vmatprep.subr.mxu0 0.0
  %367 = vmatpush2.msra.mxu0 %v163
  %368 = vmatprep.subr.mxu0 0.0
  %369 = vmatpush2.msra.mxu0 %v162
  %370 = vmatprep.subr.mxu0 0.0
  %371 = vmatpush2.msra.mxu0 %v161
  %372 = vmatprep.subr.mxu0 0.0
  %373 = vmatpush2.msra.mxu0 %v160
  %374 = vmatprep.subr.mxu0 0.0
  %375 = vmatpush2.msra.mxu0 %v159
  %376 = vmatprep.subr.mxu0 0.0
  %377 = vmatpush2.msra.mxu0 %v158
  %378 = vmatprep.mubr.f32.mxu0 %v77
  %379 = vmatmul.mubr.f32.gmra.mxu0 %v76
  %v380 = vpop.f32.mrf.mxu0
  %v381 = vadd.f32 %v311, %v380
  %v382 = vpop.f32.mrf.mxu0
  %383 = vdwg.mxu0
  %vm384 = vcmask 64512
  %v386 = vsel %vm384, %v20, 0
  %388 = vmatprep.subr.mxu0 0.0
  %389 = vmatpush1.msra.mxu0 0.0
  %390 = vmatprep.subr.mxu0 0.0
  %391 = vmatpush1.msra.mxu0 0.0
  %392 = vmatprep.subr.mxu0 0.0
  %393 = vmatpush1.msra.mxu0 0.0
  %394 = vmatprep.subr.mxu0 0.0
  %395 = vmatpush1.msra.mxu0 0.0
  %396 = vmatprep.subr.mxu0 0.0
  %397 = vmatpush1.msra.mxu0 0.0
  %398 = vmatprep.subr.mxu0 0.0
  %399 = vmatpush1.msra.mxu0 0.0
  %400 = vmatprep.subr.mxu0 0.0
  %401 = vmatpush1.msra.mxu0 0.0
  %402 = vmatprep.subr.mxu0 0.0
  %403 = vmatpush1.msra.mxu0 0.0
  %404 = vmatprep.subr.mxu0 0.0
  %405 = vmatpush1.msra.mxu0 0.0
  %406 = vmatprep.subr.mxu0 0.0
  %407 = vmatpush1.msra.mxu0 0.0
  %408 = vmatprep.subr.mxu0 0.0
  %409 = vmatpush1.msra.mxu0 0.0
  %410 = vmatprep.subr.mxu0 0.0
  %411 = vmatpush1.msra.mxu0 0.0
  %412 = vmatprep.subr.mxu0 0.0
  %413 = vmatpush1.msra.mxu0 0.0
  %414 = vmatprep.subr.mxu0 0.0
  %415 = vmatpush1.msra.mxu0 0.0
  %416 = vmatprep.subr.mxu0 0.0
  %417 = vmatpush1.msra.mxu0 0.0
  %418 = vmatprep.subr.mxu0 0.0
  %419 = vmatpush1.msra.mxu0 %v21
  %420 = vmatprep.subr.mxu0 0.0
  %421 = vmatpush2.msra.mxu0 0.0
  %422 = vmatprep.subr.mxu0 0.0
  %423 = vmatpush2.msra.mxu0 0.0
  %424 = vmatprep.subr.mxu0 0.0
  %425 = vmatpush2.msra.mxu0 0.0
  %426 = vmatprep.subr.mxu0 0.0
  %427 = vmatpush2.msra.mxu0 0.0
  %428 = vmatprep.subr.mxu0 0.0
  %429 = vmatpush2.msra.mxu0 0.0
  %430 = vmatprep.subr.mxu0 0.0
  %431 = vmatpush2.msra.mxu0 0.0
  %432 = vmatprep.subr.mxu0 0.0
  %433 = vmatpush2.msra.mxu0 0.0
  %434 = vmatprep.subr.mxu0 0.0
  %435 = vmatpush2.msra.mxu0 0.0
  %436 = vmatprep.subr.mxu0 0.0
  %437 = vmatpush2.msra.mxu0 0.0
  %438 = vmatprep.subr.mxu0 0.0
  %439 = vmatpush2.msra.mxu0 0.0
  %440 = vmatprep.subr.mxu0 0.0
  %441 = vmatpush2.msra.mxu0 0.0
  %442 = vmatprep.subr.mxu0 0.0
  %443 = vmatpush2.msra.mxu0 0.0
  %444 = vmatprep.subr.mxu0 0.0
  %445 = vmatpush2.msra.mxu0 0.0
  %446 = vmatprep.subr.mxu0 0.0
  %447 = vmatpush2.msra.mxu0 0.0
  %448 = vmatprep.subr.mxu0 0.0
  %449 = vmatpush2.msra.mxu0 0.0
  %450 = vmatprep.subr.mxu0 0.0
  %451 = vmatpush2.msra.mxu0 0.0
  %452 = vmatprep.mubr.f32.mxu0 0.0
  %453 = vmatmul.mubr.f32.gmra.mxu0 %v386
  %v454 = vpop.f32.mrf.mxu0
  %v455 = vadd.f32 %v381, %v454
  %v456 = vpop.f32.mrf.mxu0
  %457 = vdwg.mxu0
  %v458 = vld [vmem:[%s4] sm:$0x1]
  %v460 = vlaneseq
  %v461 = vshrl.u32 %v460, 7
  %v462 = vsub.s32 0, %v461
  %v463 = vrot.slane %v458, %v462
  %v465 = vadd.f32 %v455, %v463
  %466 = vst [vmem:[%s5] sm:$0xff] %v465
  // Predicated region
  $region22: #{bert_embedding.1} parent=0 // pred_check
    _
  $region23: #{bert_embedding.1} parent=0 // pred_check_branch
    %468 = sbr.rel (0) target = $region25
  $region24: #{bert_embedding.1} parent=0 // pred_region
    _
  $region25: #{bert_embedding.1} parent=0 // pred_fallthru
    _
  // Predicated region
  $region26: #{bert_embedding.1} parent=0 // pred_check
    _
  $region27: #{bert_embedding.1} parent=0 // pred_check_branch
    %470 = sbr.rel (0) target = $region29
  $region28: #{bert_embedding.1} parent=0 // pred_region
    _
  $region29: #{bert_embedding.1} parent=0 // pred_fallthru
    _

</llo_original>
